<compile_context>
chip_gen: v5e
topology: v5e:2x2
jax: 0.10.0
libtpu: 0.0.40
codegen_flags: <defaults>
</compile_context>

<pallas_src>
import functools

import jax
import jax.numpy as jnp
from jax.experimental import pallas as pl
from jax.experimental.pallas import tpu as pltpu


# ----------------------------------------------------------------------------
# Fused Pallas kernel
# ----------------------------------------------------------------------------
def _make_fused_kernel(layer_dims):
    """layer_dims: list of (C_in, C_out, K, pad, dil, p, L_pad, L_conv, L_pool)."""
    n_layers = len(layer_dims)

    def kernel(*refs):
        x_ref = refs[0]                                 # (1, L_pad0, C0) pre-padded input block
        layer_refs = refs[1:1 + 2 * n_layers]           # (W_all, bias) per layer
        wl_ref = refs[1 + 2 * n_layers]                 # (L_f, C_f, O) rearranged Linear weight
        bl_ref = refs[2 + 2 * n_layers]                 # (1, O)
        o_ref = refs[3 + 2 * n_layers]                  # (1, 1, O) output block
        scratch = refs[4 + 2 * n_layers:]
        ybufs = scratch[:n_layers]                      # conv+relu result (for strided pool reads)
        xpads = scratch[n_layers:]                      # padded inputs of layers 1..n-1

        h = x_ref[0]                                    # (L_pad0, C0) value
        for i, (C_in, C_out, K, pad, dil, p, L_pad, L_conv, L_pool) in enumerate(layer_dims):
            w_all = layer_refs[2 * i][...]              # (C_in, K*C_out): all taps in one matmul
            bias = layer_refs[2 * i + 1][...]           # (1, C_out)

            # Conv1d (stride=1) as a single MXU matmul + K-1 shifted-slice adds.
            z = jnp.dot(h, w_all, preferred_element_type=jnp.float32)   # (L_pad, K*C_out)
            acc = z[0:L_conv, 0:C_out]
            for k in range(1, K):
                acc = acc + z[k * dil:k * dil + L_conv, k * C_out:(k + 1) * C_out]
            y = jnp.maximum(acc + bias, 0.0)            # ReLU -> (L_conv, C_out)
            # TODO(synk): Dropout is identity in eval mode / p=0.0; no RNG path emitted.

            # MaxPool1d(p, p): one full store, p strided loads, (p-1) vector maxes.
            ybufs[i][...] = y
            m = ybufs[i][pl.ds(0, L_pool, stride=p), :]
            for r in range(1, p):
                m = jnp.maximum(m, ybufs[i][pl.ds(r, L_pool, stride=p), :])

            if i + 1 < n_layers:
                nxt_pad = layer_dims[i + 1][3]
                xp = xpads[i]                           # (L_pool + 2*nxt_pad, C_out)
                if nxt_pad > 0:                         # zero only the two pad strips
                    zstrip = jnp.zeros((nxt_pad, C_out), jnp.float32)
                    xp[0:nxt_pad, :] = zstrip
                    xp[nxt_pad + L_pool:, :] = zstrip
                xp[nxt_pad:nxt_pad + L_pool, :] = m     # single interior store
                h = xp[...]
            else:
                h = m                                   # (L_f, C_f), stays in registers

        # Flatten (PyTorch C-major order is folded into wl_ref) + Linear + Sigmoid.
        L_f = layer_dims[-1][8]
        acc_lin = bl_ref[...]                           # (1, O)
        for l in range(L_f):
            acc_lin = acc_lin + jnp.dot(h[l:l + 1, :], wl_ref[l],
                                        preferred_element_type=jnp.float32)
        # exp and approx reciprocal both land in the EUP slot.
        o_ref[0] = pl.reciprocal(1.0 + jnp.exp(-acc_lin), approx=True)

    return kernel


# ----------------------------------------------------------------------------
# Parameter setup (glue, plain JAX outside the kernel)
# ----------------------------------------------------------------------------
def weight_norm(v, g, eps=1e-12):
    """PyTorch weight_norm (dim=0): w = g * v / ||v|| over all dims except 0."""
    norm = jnp.sqrt(jnp.sum(v * v, axis=(1, 2), keepdims=True))
    return g[:, None, None] * v / jnp.maximum(norm, eps)


def build_cnn1d(input_size, seq_len, hidden_size, conv_kernel, pool_kernel,
                padding, dilation, output_size, key):
    layer_params = []            # [(W_all (C_in, K*C_out), bias (1, C_out)), ...]
    layer_dims = []              # static geometry per layer
    L = seq_len
    for i, (h, c, p, pad, d) in enumerate(
            zip(hidden_size, conv_kernel, pool_kernel, padding, dilation)):
        s = input_size if i == 0 else hidden_size[i - 1]
        key, k1, k2, k3 = jax.random.split(key, 4)
        v = jax.random.normal(k1, (h, s, c), jnp.float32) * 0.3      # (C_out, C_in, K)
        g = 1.0 + 0.1 * jax.random.normal(k2, (h,), jnp.float32)
        b = 0.05 * jax.random.normal(k3, (h,), jnp.float32)
        w = weight_norm(v, g)                                        # (C_out, C_in, K)
        # W_all[ci, k*C_out + co] = w[co, ci, k]
        w_all = jnp.transpose(w, (1, 2, 0)).reshape(s, c * h)        # (C_in, K*C_out)
        L_pad = L + 2 * pad
        L_conv = L_pad - d * (c - 1)                                 # stride = 1
        L_pool = (L_conv - p) // p + 1                               # MaxPool1d(p, p), floor
        layer_params.append((w_all, b.reshape(1, h)))
        layer_dims.append((s, h, c, pad, d, p, L_pad, L_conv, L_pool))
        L = L_pool
    C_f, L_f = hidden_size[-1], L
    conv_seq_len = C_f * L_f
    key, k1, k2 = jax.random.split(key, 3)
    w_lin = jax.random.normal(k1, (output_size, conv_seq_len), jnp.float32) * 0.1
    b_lin = 0.05 * jax.random.normal(k2, (output_size,), jnp.float32)
    # Fold PyTorch's Flatten order (flat index = c*L_f + l) into the Linear weight:
    # Wl_r[l, c, o] = w_lin[o, c*L_f + l]
    w_lin_r = jnp.transpose(w_lin.reshape(output_size, C_f, L_f), (2, 1, 0))  # (L_f, C_f, O)
    return layer_params, layer_dims, (w_lin_r, b_lin.reshape(1, output_size)), conv_seq_len


# ----------------------------------------------------------------------------
# Forward wrapper: one pallas_call for the whole network
# ----------------------------------------------------------------------------
def make_forward(layer_dims, output_size):
    n_layers = len(layer_dims)
    kernel = _make_fused_kernel(layer_dims)

    def forward(x_ncl, layer_params, lin_params):
        B = x_ncl.shape[0]
        C0, pad0, L_pad0 = layer_dims[0][0], layer_dims[0][3], layer_dims[0][6]
        O = output_size

        x_nlc = jnp.transpose(x_ncl, (0, 2, 1))                      # NCL -> NLC
        x0p = jnp.pad(x_nlc, ((0, 0), (pad0, pad0), (0, 0)))         # layer-0 padding in XLA

        args = [x0p]
        in_specs = [pl.BlockSpec((1, L_pad0, C0), lambda b: (b, 0, 0))]
        for (w_all, b2d) in layer_params:
            args += [w_all, b2d]
            in_specs += [pl.BlockSpec(w_all.shape, lambda b: (0, 0)),
                         pl.BlockSpec(b2d.shape, lambda b: (0, 0))]
        w_lin_r, b_lin2 = lin_params
        args += [w_lin_r, b_lin2]
        in_specs += [pl.BlockSpec(w_lin_r.shape, lambda b: (0, 0, 0)),
                     pl.BlockSpec(b_lin2.shape, lambda b: (0, 0))]

        # Scratch: conv+relu tile per layer, padded-input tile for layers 1..N-1.
        scratch_shapes = [pltpu.VMEM((d[7], d[1]), jnp.float32) for d in layer_dims]
        scratch_shapes += [pltpu.VMEM((layer_dims[i + 1][6], layer_dims[i + 1][0]),
                                      jnp.float32) for i in range(n_layers - 1)]

        out = pl.pallas_call(
            kernel,
            grid=(B,),                                               # batch-parallel grid
            in_specs=in_specs,
            out_specs=pl.BlockSpec((1, 1, O), lambda b: (b, 0, 0)),
            out_shape=jax.ShapeDtypeStruct((B, 1, O), jnp.float32),
            scratch_shapes=scratch_shapes,
            compiler_params=pltpu.CompilerParams(
                dimension_semantics=("parallel",)),                  # 2nd TC on v7x
        )(*args)
        return out.reshape(B, O)

    return forward


# ----------------------------------------------------------------------------
if __name__ == "__main__":
    key = jax.random.PRNGKey(0)

    # Small shapes consistent with the module:
    B, input_size, seq_len = 2, 4, 16
    hidden_size = [8, 8]
    conv_kernel = [3, 3]
    pool_kernel = [2, 2]
    padding = [1, 1]
    dilation = [1, 1]
    output_size = 1
    # layer 1: L 16 -> conv 16 -> pool 8 ; layer 2: L 8 -> conv 8 -> pool 4
    # conv_seq_len = 8 * 4 = 32 features into the final Linear.

    key, kp, kx = jax.random.split(key, 3)
    layer_params, layer_dims, lin_params, conv_seq_len = build_cnn1d(
        input_size, seq_len, hidden_size, conv_kernel, pool_kernel,
        padding, dilation, output_size, kp)
    assert conv_seq_len == 32

    x = jax.random.normal(kx, (B, input_size, seq_len), jnp.float32)

    forward = make_forward(layer_dims, output_size)
    fwd = jax.jit(functools.partial(forward,
                                    layer_params=layer_params,
                                    lin_params=lin_params))
    out = fwd(x)
    jax.block_until_ready(out)
    assert out.shape == (B, output_size)
    assert bool(jnp.all(jnp.isfinite(out)))
    assert bool(jnp.all((out >= 0.0) & (out <= 1.0)))
    print("KERNEL_OK")
</pallas_src>

<mosaic_0001>
module attributes {stable_mosaic.version = 11 : i64} {
  func.func @kernel(%arg0: i32, %arg1: memref<1x18x4xf32, #tpu.memory_space<vmem>>, %arg2: memref<4x24xf32, #tpu.memory_space<vmem>>, %arg3: memref<1x8xf32, #tpu.memory_space<vmem>>, %arg4: memref<8x24xf32, #tpu.memory_space<vmem>>, %arg5: memref<1x8xf32, #tpu.memory_space<vmem>>, %arg6: memref<4x8x1xf32, #tpu.memory_space<vmem>>, %arg7: memref<1x1xf32, #tpu.memory_space<vmem>>, %arg8: memref<1x1x1xf32, #tpu.memory_space<vmem>>, %arg9: memref<16x8xf32, #tpu.memory_space<vmem>>, %arg10: memref<8x8xf32, #tpu.memory_space<vmem>>, %arg11: memref<10x8xf32, #tpu.memory_space<vmem>>) attributes {dimension_semantics = [#tpu.dimension_semantics<parallel>], iteration_bounds = array<i64: 2>, scalar_prefetch = 0 : i64, scratch_operands = 3 : i64, tpu.core_type = #tpu.core_type<tc>, window_params = [{transform_indices = @transform_0, window_bounds = array<i64: 1, 18, 4>}, {pipeline_mode = #tpu.pipeline_mode<synchronous>, transform_indices = @transform_1, window_bounds = array<i64: 4, 24>}, {pipeline_mode = #tpu.pipeline_mode<synchronous>, transform_indices = @transform_2, window_bounds = array<i64: 1, 8>}, {pipeline_mode = #tpu.pipeline_mode<synchronous>, transform_indices = @transform_3, window_bounds = array<i64: 8, 24>}, {pipeline_mode = #tpu.pipeline_mode<synchronous>, transform_indices = @transform_4, window_bounds = array<i64: 1, 8>}, {pipeline_mode = #tpu.pipeline_mode<synchronous>, transform_indices = @transform_5, window_bounds = array<i64: 4, 8, 1>}, {pipeline_mode = #tpu.pipeline_mode<synchronous>, transform_indices = @transform_6, window_bounds = array<i64: 1, 1>}, {transform_indices = @transform_7, window_bounds = array<i64: 1, 1, 1>}]} {
    %c0 = arith.constant 0 : index
    %c0_0 = arith.constant 0 : index
    %c0_1 = arith.constant 0 : index
    %0 = vector.load %arg1[%c0, %c0_0, %c0_1] : memref<1x18x4xf32, #tpu.memory_space<vmem>>, vector<1x18x4xf32>
    %1 = vector.shape_cast %0 : vector<1x18x4xf32> to vector<18x4xf32>
    %c0_2 = arith.constant 0 : index
    %c0_3 = arith.constant 0 : index
    %2 = vector.load %arg2[%c0_2, %c0_3] : memref<4x24xf32, #tpu.memory_space<vmem>>, vector<4x24xf32>
    %c0_4 = arith.constant 0 : index
    %c0_5 = arith.constant 0 : index
    %3 = vector.load %arg3[%c0_4, %c0_5] : memref<1x8xf32, #tpu.memory_space<vmem>>, vector<1x8xf32>
    %cst = arith.constant dense<0.000000e+00> : vector<18x24xf32>
    %4 = tpu.matmul %1, %2, %cst {dimension_numbers = #tpu.dot_dimension_numbers<[1], [0], [0], [1], [0, 0, 1, 1], [], []>} : vector<18x4xf32>, vector<4x24xf32>, vector<18x24xf32> -> vector<18x24xf32>
    %5 = vector.extract_strided_slice %4 {offsets = [0, 0], sizes = [16, 8], strides = [1, 1]} : vector<18x24xf32> to vector<16x8xf32>
    %6 = vector.extract_strided_slice %4 {offsets = [1, 8], sizes = [16, 8], strides = [1, 1]} : vector<18x24xf32> to vector<16x8xf32>
    %7 = arith.addf %5, %6 : vector<16x8xf32>
    %8 = vector.extract_strided_slice %4 {offsets = [2, 16], sizes = [16, 8], strides = [1, 1]} : vector<18x24xf32> to vector<16x8xf32>
    %9 = arith.addf %7, %8 : vector<16x8xf32>
    %10 = vector.broadcast %3 : vector<1x8xf32> to vector<16x8xf32>
    %11 = arith.addf %9, %10 : vector<16x8xf32>
    %cst_6 = arith.constant 0.000000e+00 : f32
    %12 = vector.broadcast %cst_6 : f32 to vector<16x8xf32>
    %13 = arith.maximumf %11, %12 : vector<16x8xf32>
    %c0_7 = arith.constant 0 : index
    %c0_8 = arith.constant 0 : index
    %14 = vector.load %arg9[%c0_7, %c0_8] : memref<16x8xf32, #tpu.memory_space<vmem>>, vector<16x8xf32>
    tpu.vector_store %arg9[%c0_7, %c0_8], %13 {strides = array<i32>} : memref<16x8xf32, #tpu.memory_space<vmem>>, vector<16x8xf32>,
    %c0_9 = arith.constant 0 : index
    %c0_10 = arith.constant 0 : index
    %15 = tpu.strided_load %arg9[%c0_9, %c0_10] {strides = array<i32: 2, 1>} : memref<16x8xf32, #tpu.memory_space<vmem>>, vector<8x8xf32>
    %c1 = arith.constant 1 : index
    %c0_11 = arith.constant 0 : index
    %16 = tpu.strided_load %arg9[%c1, %c0_11] {strides = array<i32: 2, 1>} : memref<16x8xf32, #tpu.memory_space<vmem>>, vector<8x8xf32>
    %17 = arith.maximumf %15, %16 : vector<8x8xf32>
    %cst_12 = arith.constant 0.000000e+00 : f32
    %18 = vector.broadcast %cst_12 : f32 to vector<1x8xf32>
    %c0_13 = arith.constant 0 : index
    %c0_14 = arith.constant 0 : index
    %19 = vector.load %arg11[%c0_13, %c0_14] : memref<10x8xf32, #tpu.memory_space<vmem>>, vector<1x8xf32>
    tpu.vector_store %arg11[%c0_13, %c0_14], %18 {strides = array<i32>} : memref<10x8xf32, #tpu.memory_space<vmem>>, vector<1x8xf32>,
    %c9 = arith.constant 9 : index
    %c0_15 = arith.constant 0 : index
    %20 = vector.load %arg11[%c9, %c0_15] : memref<10x8xf32, #tpu.memory_space<vmem>>, vector<1x8xf32>
    tpu.vector_store %arg11[%c9, %c0_15], %18 {strides = array<i32>} : memref<10x8xf32, #tpu.memory_space<vmem>>, vector<1x8xf32>,
    %c1_16 = arith.constant 1 : index
    %c0_17 = arith.constant 0 : index
    %21 = vector.load %arg11[%c1_16, %c0_17] : memref<10x8xf32, #tpu.memory_space<vmem>>, vector<8x8xf32>
    tpu.vector_store %arg11[%c1_16, %c0_17], %17 {strides = array<i32>} : memref<10x8xf32, #tpu.memory_space<vmem>>, vector<8x8xf32>,
    %c0_18 = arith.constant 0 : index
    %c0_19 = arith.constant 0 : index
    %22 = vector.load %arg11[%c0_18, %c0_19] : memref<10x8xf32, #tpu.memory_space<vmem>>, vector<10x8xf32>
    %c0_20 = arith.constant 0 : index
    %c0_21 = arith.constant 0 : index
    %23 = vector.load %arg4[%c0_20, %c0_21] : memref<8x24xf32, #tpu.memory_space<vmem>>, vector<8x24xf32>
    %c0_22 = arith.constant 0 : index
    %c0_23 = arith.constant 0 : index
    %24 = vector.load %arg5[%c0_22, %c0_23] : memref<1x8xf32, #tpu.memory_space<vmem>>, vector<1x8xf32>
    %cst_24 = arith.constant dense<0.000000e+00> : vector<10x24xf32>
    %25 = tpu.matmul %22, %23, %cst_24 {dimension_numbers = #tpu.dot_dimension_numbers<[1], [0], [0], [1], [0, 0, 1, 1], [], []>} : vector<10x8xf32>, vector<8x24xf32>, vector<10x24xf32> -> vector<10x24xf32>
    %26 = vector.extract_strided_slice %25 {offsets = [0, 0], sizes = [8, 8], strides = [1, 1]} : vector<10x24xf32> to vector<8x8xf32>
    %27 = vector.extract_strided_slice %25 {offsets = [1, 8], sizes = [8, 8], strides = [1, 1]} : vector<10x24xf32> to vector<8x8xf32>
    %28 = arith.addf %26, %27 : vector<8x8xf32>
    %29 = vector.extract_strided_slice %25 {offsets = [2, 16], sizes = [8, 8], strides = [1, 1]} : vector<10x24xf32> to vector<8x8xf32>
    %30 = arith.addf %28, %29 : vector<8x8xf32>
    %31 = vector.broadcast %24 : vector<1x8xf32> to vector<8x8xf32>
    %32 = arith.addf %30, %31 : vector<8x8xf32>
    %cst_25 = arith.constant 0.000000e+00 : f32
    %33 = vector.broadcast %cst_25 : f32 to vector<8x8xf32>
    %34 = arith.maximumf %32, %33 : vector<8x8xf32>
    %c0_26 = arith.constant 0 : index
    %c0_27 = arith.constant 0 : index
    %35 = vector.load %arg10[%c0_26, %c0_27] : memref<8x8xf32, #tpu.memory_space<vmem>>, vector<8x8xf32>
    tpu.vector_store %arg10[%c0_26, %c0_27], %34 {strides = array<i32>} : memref<8x8xf32, #tpu.memory_space<vmem>>, vector<8x8xf32>,
    %c0_28 = arith.constant 0 : index
    %c0_29 = arith.constant 0 : index
    %36 = tpu.strided_load %arg10[%c0_28, %c0_29] {strides = array<i32: 2, 1>} : memref<8x8xf32, #tpu.memory_space<vmem>>, vector<4x8xf32>
    %c1_30 = arith.constant 1 : index
    %c0_31 = arith.constant 0 : index
    %37 = tpu.strided_load %arg10[%c1_30, %c0_31] {strides = array<i32: 2, 1>} : memref<8x8xf32, #tpu.memory_space<vmem>>, vector<4x8xf32>
    %38 = arith.maximumf %36, %37 : vector<4x8xf32>
    %c0_32 = arith.constant 0 : index
    %c0_33 = arith.constant 0 : index
    %39 = vector.load %arg7[%c0_32, %c0_33] : memref<1x1xf32, #tpu.memory_space<vmem>>, vector<1x1xf32>
    %40 = vector.extract_strided_slice %38 {offsets = [0, 0], sizes = [1, 8], strides = [1, 1]} : vector<4x8xf32> to vector<1x8xf32>
    %c0_34 = arith.constant 0 : index
    %c0_35 = arith.constant 0 : index
    %c0_36 = arith.constant 0 : index
    %41 = vector.load %arg6[%c0_34, %c0_35, %c0_36] : memref<4x8x1xf32, #tpu.memory_space<vmem>>, vector<1x8x1xf32>
    %42 = vector.shape_cast %41 : vector<1x8x1xf32> to vector<8x1xf32>
    %cst_37 = arith.constant dense<0.000000e+00> : vector<1x1xf32>
    %43 = tpu.matmul %40, %42, %cst_37 {dimension_numbers = #tpu.dot_dimension_numbers<[1], [0], [0], [1], [0, 0, 1, 1], [], []>} : vector<1x8xf32>, vector<8x1xf32>, vector<1x1xf32> -> vector<1x1xf32>
    %44 = arith.addf %39, %43 : vector<1x1xf32>
    %45 = vector.extract_strided_slice %38 {offsets = [1, 0], sizes = [1, 8], strides = [1, 1]} : vector<4x8xf32> to vector<1x8xf32>
    %c1_38 = arith.constant 1 : index
    %c0_39 = arith.constant 0 : index
    %c0_40 = arith.constant 0 : index
    %46 = vector.load %arg6[%c1_38, %c0_39, %c0_40] : memref<4x8x1xf32, #tpu.memory_space<vmem>>, vector<1x8x1xf32>
    %47 = vector.shape_cast %46 : vector<1x8x1xf32> to vector<8x1xf32>
    %cst_41 = arith.constant dense<0.000000e+00> : vector<1x1xf32>
    %48 = tpu.matmul %45, %47, %cst_41 {dimension_numbers = #tpu.dot_dimension_numbers<[1], [0], [0], [1], [0, 0, 1, 1], [], []>} : vector<1x8xf32>, vector<8x1xf32>, vector<1x1xf32> -> vector<1x1xf32>
    %49 = arith.addf %44, %48 : vector<1x1xf32>
    %50 = vector.extract_strided_slice %38 {offsets = [2, 0], sizes = [1, 8], strides = [1, 1]} : vector<4x8xf32> to vector<1x8xf32>
    %c2 = arith.constant 2 : index
    %c0_42 = arith.constant 0 : index
    %c0_43 = arith.constant 0 : index
    %51 = vector.load %arg6[%c2, %c0_42, %c0_43] : memref<4x8x1xf32, #tpu.memory_space<vmem>>, vector<1x8x1xf32>
    %52 = vector.shape_cast %51 : vector<1x8x1xf32> to vector<8x1xf32>
    %cst_44 = arith.constant dense<0.000000e+00> : vector<1x1xf32>
    %53 = tpu.matmul %50, %52, %cst_44 {dimension_numbers = #tpu.dot_dimension_numbers<[1], [0], [0], [1], [0, 0, 1, 1], [], []>} : vector<1x8xf32>, vector<8x1xf32>, vector<1x1xf32> -> vector<1x1xf32>
    %54 = arith.addf %49, %53 : vector<1x1xf32>
    %55 = vector.extract_strided_slice %38 {offsets = [3, 0], sizes = [1, 8], strides = [1, 1]} : vector<4x8xf32> to vector<1x8xf32>
    %c3 = arith.constant 3 : index
    %c0_45 = arith.constant 0 : index
    %c0_46 = arith.constant 0 : index
    %56 = vector.load %arg6[%c3, %c0_45, %c0_46] : memref<4x8x1xf32, #tpu.memory_space<vmem>>, vector<1x8x1xf32>
    %57 = vector.shape_cast %56 : vector<1x8x1xf32> to vector<8x1xf32>
    %cst_47 = arith.constant dense<0.000000e+00> : vector<1x1xf32>
    %58 = tpu.matmul %55, %57, %cst_47 {dimension_numbers = #tpu.dot_dimension_numbers<[1], [0], [0], [1], [0, 0, 1, 1], [], []>} : vector<1x8xf32>, vector<8x1xf32>, vector<1x1xf32> -> vector<1x1xf32>
    %59 = arith.addf %54, %58 : vector<1x1xf32>
    %cst_48 = arith.constant 0.000000e+00 : f32
    %60 = vector.broadcast %cst_48 : f32 to vector<1x1xf32>
    %61 = arith.subf %60, %59 : vector<1x1xf32>
    %62 = math.exp %61 : vector<1x1xf32>
    %cst_49 = arith.constant 1.000000e+00 : f32
    %63 = vector.broadcast %cst_49 : f32 to vector<1x1xf32>
    %64 = arith.addf %63, %62 : vector<1x1xf32>
    %65 = tpu.reciprocal %64 {approx = true} : vector<1x1xf32> -> vector<1x1xf32>
    %c0_50 = arith.constant 0 : index
    %c0_51 = arith.constant 0 : index
    %c0_52 = arith.constant 0 : index
    %66 = vector.load %arg8[%c0_50, %c0_51, %c0_52] : memref<1x1x1xf32, #tpu.memory_space<vmem>>, vector<1x1x1xf32>
    %67 = vector.shape_cast %66 : vector<1x1x1xf32> to vector<1x1xf32>
    %68 = vector.shape_cast %65 : vector<1x1xf32> to vector<1x1x1xf32>
    tpu.vector_store %arg8[%c0_50, %c0_51, %c0_52], %68 {strides = array<i32>} : memref<1x1x1xf32, #tpu.memory_space<vmem>>, vector<1x1x1xf32>,
    return
  }
  func.func @transform_0(%arg0: i32) -> (i32, i32, i32) {
    %c0_i32 = arith.constant 0 : i32
    %c0_i32_0 = arith.constant 0 : i32
    %c0_i32_1 = arith.constant 0 : i32
    return %arg0, %c0_i32, %c0_i32_0 : i32, i32, i32
  }
  func.func @transform_1(%arg0: i32) -> (i32, i32) {
    %c0_i32 = arith.constant 0 : i32
    %c0_i32_0 = arith.constant 0 : i32
    %c0_i32_1 = arith.constant 0 : i32
    return %c0_i32, %c0_i32_0 : i32, i32
  }
  func.func @transform_2(%arg0: i32) -> (i32, i32) {
    %c0_i32 = arith.constant 0 : i32
    %c0_i32_0 = arith.constant 0 : i32
    %c0_i32_1 = arith.constant 0 : i32
    return %c0_i32, %c0_i32_0 : i32, i32
  }
  func.func @transform_3(%arg0: i32) -> (i32, i32) {
    %c0_i32 = arith.constant 0 : i32
    %c0_i32_0 = arith.constant 0 : i32
    %c0_i32_1 = arith.constant 0 : i32
    return %c0_i32, %c0_i32_0 : i32, i32
  }
  func.func @transform_4(%arg0: i32) -> (i32, i32) {
    %c0_i32 = arith.constant 0 : i32
    %c0_i32_0 = arith.constant 0 : i32
    %c0_i32_1 = arith.constant 0 : i32
    return %c0_i32, %c0_i32_0 : i32, i32
  }
  func.func @transform_5(%arg0: i32) -> (i32, i32, i32) {
    %c0_i32 = arith.constant 0 : i32
    %c0_i32_0 = arith.constant 0 : i32
    %c0_i32_1 = arith.constant 0 : i32
    %c0_i32_2 = arith.constant 0 : i32
    return %c0_i32, %c0_i32_0, %c0_i32_1 : i32, i32, i32
  }
  func.func @transform_6(%arg0: i32) -> (i32, i32) {
    %c0_i32 = arith.constant 0 : i32
    %c0_i32_0 = arith.constant 0 : i32
    %c0_i32_1 = arith.constant 0 : i32
    return %c0_i32, %c0_i32_0 : i32, i32
  }
  func.func @transform_7(%arg0: i32) -> (i32, i32, i32) {
    %c0_i32 = arith.constant 0 : i32
    %c0_i32_0 = arith.constant 0 : i32
    %c0_i32_1 = arith.constant 0 : i32
    return %arg0, %c0_i32, %c0_i32_0 : i32, i32, i32
  }
}

</mosaic_0001>

<llo_original>
// kernel: forward.1
$region0: #{forward.1}
  #allocation0 [shape = 'u32[]', space=smem, size = 0x4, offset = 0x4, fixed_abs, tag = 'smem constant byte address 0x4 - core index']
  #allocation1 [shape = 'u32[72,128]{1,0:T(1,128)}', space=vmem, size = 0x9000, scoped, tag = 'internal scratch']
  #allocation2 [shape = 'f32[16,8]{1,0:T(8,128)}', space=vmem, size = 0x2000, scoped, tag = 'scratch operand']
  #allocation3 [shape = 'f32[8,8]{1,0:T(8,128)}', space=vmem, size = 0x1000, scoped, tag = 'scratch operand']
  #allocation4 [shape = 'f32[10,8]{1,0:T(8,128)}', space=vmem, size = 0x2000, scoped, tag = 'scratch operand']
  #allocation5 [shape = 'f32[1,1]{1,0:T(1,128)S(1)}', space=vmem, size = 0x200, scoped, tag = 'scoped memory for forward.1']
  %s0 = inlined_call_operand.vmem [shape: f32[2,18,4], index: 0, kind: input, shape index: {}]
  %s1 = inlined_call_operand.vmem [shape: f32[4,24], index: 1, kind: input, shape index: {}]
  %s2 = inlined_call_operand.vmem [shape: f32[1,8], index: 2, kind: input, shape index: {}]
  %s3 = inlined_call_operand.vmem [shape: f32[8,24], index: 3, kind: input, shape index: {}]
  %s4 = inlined_call_operand.vmem [shape: f32[1,8], index: 4, kind: input, shape index: {}]
  %s5 = inlined_call_operand.vmem [shape: f32[4,8,1], index: 5, kind: input, shape index: {}]
  %s6 = inlined_call_operand.<no memory space> [shape: f32[1,1], index: 6, kind: input, shape index: {}]
  %s7 = inlined_call_operand.vmem [shape: f32[2,1,1], index: 7, kind: output, shape index: {}]
  %s8 = sld [smem:[#allocation0]]
  $region61: #{forward.1} parent=0
    _
  %s10 = ssub.s32 1, %s8
  %s11 = scalar_select 0, %s10, %s8
  %v12 = vstv %s6
  %13 = vst [vmem:[#allocation5] sm:$0x1] %v12
  loop: start=0, step=1, limit=4
  $region2: #{forward.1} parent=0 // loop_pre_header
    _
  $region3: #{forward.1} parent=0 // loop_header
    %s15 = sphi 0, %s19
    %p16 = scmp.ge.s32.totalorder %s15, 4
    %s25 = sphi 0, %s27
    %s28 = sphi 0, %s25
    %s29 = sphi 0, %s28
    %s45 = sphi 0, %s29
    %s49 = sphi 0, %s49
    %s51 = sphi 0, %s49
    %s52 = sphi 0, %s51
    %s66 = sphi 0, %s52
    %s70 = sphi 0, %s70
    %s72 = sphi 0, %s70
    %s73 = sphi 0, %s72
    %s87 = sphi 0, %s73
    %s91 = sphi 0, %s91
    %s93 = sphi 0, %s91
    %s94 = sphi 0, %s93
    %s108 = sphi 0, %s94
    %s112 = sphi 0, %s112
    %s114 = sphi 0, %s112
    %s115 = sphi 0, %s114
    %s129 = sphi 0, %s115
    %s133 = sphi 0, %s133
    %s135 = sphi 0, %s133
    %s136 = sphi 0, %s135
    %s150 = sphi 0, %s136
    %s154 = sphi 0, %s154
    %s156 = sphi 0, %s154
    %s157 = sphi 0, %s156
    %s171 = sphi 0, %s157
    %s177 = sphi 0, %s179
    %s180 = sphi 0, %s177
    %s181 = sphi 0, %s180
    %s197 = sphi 0, %s181
  $region4: #{forward.1} parent=0 // loop_header_branch
    %18 = sbr.rel (%p16) target = $region8
  $region5: #{forward.1} parent=0 // loop_body
    %s20 = ssub.s32 %s15, 1
    %s21 = ssub.s32 %s15, 2
    %s22 = sadd.s32 %s15, 1
    %s23 = ssub.s32 %s15, %s22
    %p24 = scmp.eq.s32.totalorder %s23, 0
    %s26 = sadd.s32 %s25, 1
    %s27 = scalar_select %p24, %s25, %s26
    %p30 = pneg %p24
    %p31 = scmp.eq.s32.totalorder %s15, 1
    %p32 = por %p30, %p31
    %p33 = scmp.ne.s32.totalorder %s25, %s28
    %p34 = scmp.eq.s32.totalorder %s15, 0
    %p35 = por %p33, %p34
    %p36 = scmp.ne.s32.totalorder %s25, %s28
    %p37 = scmp.eq.s32.totalorder %s20, 1
    %p38 = por %p36, %p37
    %p39 = scmp.ne.s32.totalorder %s28, %s29
    %p40 = scmp.eq.s32.totalorder %s20, 0
    %p41 = por %p39, %p40
    %p42 = scmp.ne.s32.totalorder %s28, %s29
    %p43 = scmp.eq.s32.totalorder %s21, 1
    %p44 = por %p42, %p43
    %p46 = scmp.ne.s32.totalorder %s29, %s45
    %p47 = scmp.eq.s32.totalorder %s21, 0
    %p48 = por %p46, %p47
    %s50 = sadd.s32 %s49, 1
    %p53 = scmp.eq.s32.totalorder %s15, 1
    %p54 = scmp.ne.s32.totalorder %s49, %s51
    %p55 = scmp.eq.s32.totalorder %s15, 0
    %p56 = por %p54, %p55
    %p57 = scmp.ne.s32.totalorder %s49, %s51
    %p58 = scmp.eq.s32.totalorder %s20, 1
    %p59 = por %p57, %p58
    %p60 = scmp.ne.s32.totalorder %s51, %s52
    %p61 = scmp.eq.s32.totalorder %s20, 0
    %p62 = por %p60, %p61
    %p63 = scmp.ne.s32.totalorder %s51, %s52
    %p64 = scmp.eq.s32.totalorder %s21, 1
    %p65 = por %p63, %p64
    %p67 = scmp.ne.s32.totalorder %s52, %s66
    %p68 = scmp.eq.s32.totalorder %s21, 0
    %p69 = por %p67, %p68
    %s71 = sadd.s32 %s70, 1
    %p74 = scmp.eq.s32.totalorder %s15, 1
    %p75 = scmp.ne.s32.totalorder %s70, %s72
    %p76 = scmp.eq.s32.totalorder %s15, 0
    %p77 = por %p75, %p76
    %p78 = scmp.ne.s32.totalorder %s70, %s72
    %p79 = scmp.eq.s32.totalorder %s20, 1
    %p80 = por %p78, %p79
    %p81 = scmp.ne.s32.totalorder %s72, %s73
    %p82 = scmp.eq.s32.totalorder %s20, 0
    %p83 = por %p81, %p82
    %p84 = scmp.ne.s32.totalorder %s72, %s73
    %p85 = scmp.eq.s32.totalorder %s21, 1
    %p86 = por %p84, %p85
    %p88 = scmp.ne.s32.totalorder %s73, %s87
    %p89 = scmp.eq.s32.totalorder %s21, 0
    %p90 = por %p88, %p89
    %s92 = sadd.s32 %s91, 1
    %p95 = scmp.eq.s32.totalorder %s15, 1
    %p96 = scmp.ne.s32.totalorder %s91, %s93
    %p97 = scmp.eq.s32.totalorder %s15, 0
    %p98 = por %p96, %p97
    %p99 = scmp.ne.s32.totalorder %s91, %s93
    %p100 = scmp.eq.s32.totalorder %s20, 1
    %p101 = por %p99, %p100
    %p102 = scmp.ne.s32.totalorder %s93, %s94
    %p103 = scmp.eq.s32.totalorder %s20, 0
    %p104 = por %p102, %p103
    %p105 = scmp.ne.s32.totalorder %s93, %s94
    %p106 = scmp.eq.s32.totalorder %s21, 1
    %p107 = por %p105, %p106
    %p109 = scmp.ne.s32.totalorder %s94, %s108
    %p110 = scmp.eq.s32.totalorder %s21, 0
    %p111 = por %p109, %p110
    %s113 = sadd.s32 %s112, 1
    %p116 = scmp.eq.s32.totalorder %s15, 1
    %p117 = scmp.ne.s32.totalorder %s112, %s114
    %p118 = scmp.eq.s32.totalorder %s15, 0
    %p119 = por %p117, %p118
    %p120 = scmp.ne.s32.totalorder %s112, %s114
    %p121 = scmp.eq.s32.totalorder %s20, 1
    %p122 = por %p120, %p121
    %p123 = scmp.ne.s32.totalorder %s114, %s115
    %p124 = scmp.eq.s32.totalorder %s20, 0
    %p125 = por %p123, %p124
    %p126 = scmp.ne.s32.totalorder %s114, %s115
    %p127 = scmp.eq.s32.totalorder %s21, 1
    %p128 = por %p126, %p127
    %p130 = scmp.ne.s32.totalorder %s115, %s129
    %p131 = scmp.eq.s32.totalorder %s21, 0
    %p132 = por %p130, %p131
    %s134 = sadd.s32 %s133, 1
    %p137 = scmp.eq.s32.totalorder %s15, 1
    %p138 = scmp.ne.s32.totalorder %s133, %s135
    %p139 = scmp.eq.s32.totalorder %s15, 0
    %p140 = por %p138, %p139
    %p141 = scmp.ne.s32.totalorder %s133, %s135
    %p142 = scmp.eq.s32.totalorder %s20, 1
    %p143 = por %p141, %p142
    %p144 = scmp.ne.s32.totalorder %s135, %s136
    %p145 = scmp.eq.s32.totalorder %s20, 0
    %p146 = por %p144, %p145
    %p147 = scmp.ne.s32.totalorder %s135, %s136
    %p148 = scmp.eq.s32.totalorder %s21, 1
    %p149 = por %p147, %p148
    %p151 = scmp.ne.s32.totalorder %s136, %s150
    %p152 = scmp.eq.s32.totalorder %s21, 0
    %p153 = por %p151, %p152
    %s155 = sadd.s32 %s154, 1
    %p158 = scmp.eq.s32.totalorder %s15, 1
    %p159 = scmp.ne.s32.totalorder %s154, %s156
    %p160 = scmp.eq.s32.totalorder %s15, 0
    %p161 = por %p159, %p160
    %p162 = scmp.ne.s32.totalorder %s154, %s156
    %p163 = scmp.eq.s32.totalorder %s20, 1
    %p164 = por %p162, %p163
    %p165 = scmp.ne.s32.totalorder %s156, %s157
    %p166 = scmp.eq.s32.totalorder %s20, 0
    %p167 = por %p165, %p166
    %p168 = scmp.ne.s32.totalorder %s156, %s157
    %p169 = scmp.eq.s32.totalorder %s21, 1
    %p170 = por %p168, %p169
    %p172 = scmp.ne.s32.totalorder %s157, %s171
    %p173 = scmp.eq.s32.totalorder %s21, 0
    %p174 = por %p172, %p173
    %s175 = ssub.s32 %s15, %s22
    %p176 = scmp.eq.s32.totalorder %s175, 0
    %s178 = sadd.s32 %s177, 1
    %s179 = scalar_select %p176, %s177, %s178
    %p182 = pneg %p176
    %p183 = scmp.eq.s32.totalorder %s15, 1
    %p184 = por %p182, %p183
    %p185 = scmp.ne.s32.totalorder %s177, %s180
    %p186 = scmp.eq.s32.totalorder %s15, 0
    %p187 = por %p185, %p186
    %p188 = scmp.ne.s32.totalorder %s177, %s180
    %p189 = scmp.eq.s32.totalorder %s20, 1
    %p190 = por %p188, %p189
    %p191 = scmp.ne.s32.totalorder %s180, %s181
    %p192 = scmp.eq.s32.totalorder %s20, 0
    %p193 = por %p191, %p192
    %p194 = scmp.ne.s32.totalorder %s180, %s181
    %p195 = scmp.eq.s32.totalorder %s21, 1
    %p196 = por %p194, %p195
    %p198 = scmp.ne.s32.totalorder %s181, %s197
    %p199 = scmp.eq.s32.totalorder %s21, 0
    %p200 = por %p198, %p199
    %p201 = scmp.le.s32.totalorder 1, %s15
    %p202 = scmp.lt.s32.totalorder %s15, 3
    %p203 = pnand %p201, %p202
    %p204 = pneg %p203
    // Predicated region
    $region9: #{forward.1} parent=5 // pred_check
      _
    $region10: #{forward.1} parent=5 // pred_check_branch
      %206 = sbr.rel (%p203) target = $region12
    $region11: #{forward.1} parent=5 // pred_region
      %s207 = ssub.s32 %s15, 1
      // Predicated region
      $region13: #{forward.1} parent=11 // pred_check
        %p208 = pneg %p62
      $region14: #{forward.1} parent=11 // pred_check_branch
        %210 = sbr.rel (%p208) target = $region16
      $region15: #{forward.1} parent=11 // pred_region
        _
      $region16: #{forward.1} parent=11 // pred_fallthru
        _
      // Predicated region
      $region17: #{forward.1} parent=11 // pred_check
        %p211 = pneg %p83
      $region18: #{forward.1} parent=11 // pred_check_branch
        %213 = sbr.rel (%p211) target = $region20
      $region19: #{forward.1} parent=11 // pred_region
        _
      $region20: #{forward.1} parent=11 // pred_fallthru
        _
      // Predicated region
      $region21: #{forward.1} parent=11 // pred_check
        %p214 = pneg %p104
      $region22: #{forward.1} parent=11 // pred_check_branch
        %216 = sbr.rel (%p214) target = $region24
      $region23: #{forward.1} parent=11 // pred_region
        _
      $region24: #{forward.1} parent=11 // pred_fallthru
        _
      // Predicated region
      $region25: #{forward.1} parent=11 // pred_check
        %p217 = pneg %p125
      $region26: #{forward.1} parent=11 // pred_check_branch
        %219 = sbr.rel (%p217) target = $region28
      $region27: #{forward.1} parent=11 // pred_region
        _
      $region28: #{forward.1} parent=11 // pred_fallthru
        _
      // Predicated region
      $region29: #{forward.1} parent=11 // pred_check
        %p220 = pneg %p146
      $region30: #{forward.1} parent=11 // pred_check_branch
        %222 = sbr.rel (%p220) target = $region32
      $region31: #{forward.1} parent=11 // pred_region
        _
      $region32: #{forward.1} parent=11 // pred_fallthru
        _
      // Predicated region
      $region33: #{forward.1} parent=11 // pred_check
        %p223 = pneg %p167
      $region34: #{forward.1} parent=11 // pred_check_branch
        %225 = sbr.rel (%p223) target = $region36
      $region35: #{forward.1} parent=11 // pred_region
        _
      $region36: #{forward.1} parent=11 // pred_fallthru
        _
    $region12: #{forward.1} parent=5 // pred_fallthru
      _
    %p226 = scmp.lt.s32.totalorder %s15, 2
    // Predicated region
    $region37: #{forward.1} parent=5 // pred_check
      %p227 = pneg %p226
    $region38: #{forward.1} parent=5 // pred_check_branch
      %229 = sbr.rel (%p227) target = $region40
    $region39: #{forward.1} parent=5 // pred_region
      // Predicated region
      $region41: #{forward.1} parent=39 // pred_check
        %p230 = pneg %p35
      $region42: #{forward.1} parent=39 // pred_check_branch
        %232 = sbr.rel (%p230) target = $region44
      $region43: #{forward.1} parent=39 // pred_region
        %p233 = scmp.lt.s32.totalorder %s15, 1
        %s234 = scalar_select %p233, %s15, 1
        %s235 = smul.addr %s234, 3
        %s236 = smul.addr %s235, 8
        %s237 = scalar_lea.vmem %s0, %s236
      $region44: #{forward.1} parent=39 // pred_fallthru
        _
    $region40: #{forward.1} parent=5 // pred_fallthru
      _
    %p238 = scmp.le.s32.totalorder 1, %s15
    %p239 = scmp.lt.s32.totalorder %s15, 3
    %p240 = pnand %p238, %p239
    %p241 = pneg %p240
    // Predicated region
    $region45: #{forward.1} parent=5 // pred_check
      _
    $region46: #{forward.1} parent=5 // pred_check_branch
      %243 = sbr.rel (%p240) target = $region48
    $region47: #{forward.1} parent=5 // pred_region
      %s244 = ssub.s32 %s15, 1
      %p245 = scmp.lt.s32.totalorder %s20, 1
      %s246 = scalar_select %p245, %s20, 1
      %s247 = smul.addr %s246, 3
      %s248 = smul.addr %s247, 8
      %s249 = scalar_lea.vmem %s0, %s248
      %p250 = pneg %p41
      %p251 = pneg %p38
      %p252 = pneg %p62
      %p253 = pneg %p59
      %p254 = pneg %p83
      %p255 = pneg %p80
      %p256 = pneg %p104
      %p257 = pneg %p101
      %p258 = pneg %p125
      %p259 = pneg %p122
      %p260 = pneg %p146
      %p261 = pneg %p143
      %p262 = pneg %p167
      %p263 = pneg %p164
      %p264 = pneg %p193
      %p265 = pneg %p190
      %p266 = scmp.lt.s32.totalorder %s20, 1
      %s267 = scalar_select %p266, %s20, 1
      %s268 = scalar_lea.vmem %s7, %s267
      %p269 = scmp.lt.s32.totalorder %s20, 1
      %s270 = scalar_select %p269, %s20, 1
      %s271 = smul.addr %s270, 3
      %s272 = smul.addr %s271, 8
      %s273 = scalar_lea.vmem %s0, %s272
      %p274 = scmp.lt.s32.totalorder %s20, 1
      %s275 = scalar_select %p274, %s20, 1
      %s276 = scalar_lea.vmem %s7, %s275
      %v277 = vld [vmem:[%s273] sm:$0xff]
      %v278 = vld [vmem:[%s273 + $0x8] sm:$0xff]
      %v279 = vld [vmem:[%s273 + $0x10] sm:$0x3]
      %v280 = vld [vmem:[%s1] sm:$0xf]
      %v281 = vld [vmem:[%s2] sm:$0x1]
      %vm282 = vcmask 31744
      %v284 = vsel %vm282, %v277, 0
      %v287 = vsel %vm282, %v278, 0
      %v290 = vsel %vm282, %v279, 0
      %vm292 = vcmask 1043456
      %v294 = vsel %vm292, %v280, 0
      %296 = vmatpush.msra.mxu0 0.0
      %297 = vmatpush.msra.mxu0 0.0
      %298 = vmatpush.msra.mxu0 0.0
      %299 = vmatpush.msra.mxu0 0.0
      %300 = vmatpush.msra.mxu0 0.0
      %301 = vmatpush.msra.mxu0 0.0
      %302 = vmatpush.msra.mxu0 0.0
      %303 = vmatpush.msra.mxu0 0.0
      %304 = vmatpush.msra.mxu0 0.0
      %305 = vmatpush.msra.mxu0 0.0
      %306 = vmatpush.msra.mxu0 0.0
      %307 = vmatpush.msra.mxu0 0.0
      %308 = vmatpush.msra.mxu0 0.0
      %309 = vmatpush.msra.mxu0 0.0
      %310 = vmatpush.msra.mxu0 0.0
      %311 = vmatpush.msra.mxu0 %v294
      %312 = vmatmul.f32.gmra.mxu0 %v284
      %v313 = vpop.f32.mrf.mxu0
      %v314 = vadd.f32 0.0, %v313
      %315 = vmatmul.f32.gmra.mxu0 %v287
      %v316 = vpop.f32.mrf.mxu0
      %v317 = vadd.f32 0.0, %v316
      %318 = vmatmul.f32.gmra.mxu0 %v290
      %v319 = vpop.f32.mrf.mxu0
      %v320 = vadd.f32 0.0, %v319
      %321 = vdwg.mxu0
      %vm325 = vcmask 1046528
      %v326 = vrot.slane %v314, 1
      %v327 = vrot.slane %v317, 1
      %v328 = vsel %vm325, %v326, %v327
      %v329 = vrot.slane %v320, 1
      %v330 = vsel %vm325, %v327, %v329
      %331 = vrot.lane.b32.xlu0 %v328, 120
      %v332 = vpop.permute.xlu0 %331
      %333 = vrot.lane.b32.xlu0 %v330, 120
      %v334 = vpop.permute.xlu0 %333
      %v337 = vadd.f32 %v314, %v332
      %v338 = vadd.f32 %v317, %v334
      %vm339 = vcmask 1045504
      %v340 = vrot.slane %v314, 2
      %v341 = vrot.slane %v317, 2
      %v342 = vsel %vm339, %v340, %v341
      %v343 = vrot.slane %v320, 2
      %v344 = vsel %vm339, %v341, %v343
      %345 = vrot.lane.b32.xlu0 %v342, 112
      %v346 = vpop.permute.xlu0 %345
      %347 = vrot.lane.b32.xlu0 %v344, 112
      %v348 = vpop.permute.xlu0 %347
      %v351 = vadd.f32 %v337, %v346
      %v352 = vadd.f32 %v338, %v348
      %v354 = vperm.slane %v281, 0
      %v356 = vadd.f32 %v351, %v354
      %v357 = vadd.f32 %v352, %v354
      %v358 = vmax.f32 %v356, 0.0
      %v359 = vmax.f32 %v357, 0.0
      %vm360 = vcmask 64512
      %361 = vst.msk [vmem:[#allocation2] sm:$0xff] %vm360, %v358
      %362 = vst.msk [vmem:[#allocation2 + $0x8] sm:$0xff] %vm360, %v359
      %v363 = vld [vmem:[#allocation2] ss:$2 sm:$0xff]
      %s364 = scalar_lea.vmem [#allocation2], 1
      %v365 = vld [vmem:[%s364] ss:$2 sm:$0xff]
      %v366 = vmax.f32 %v363, %v365
      %vm367 = vcmask 57344
      %368 = vst.msk [vmem:[#allocation4] sm:$0x1] %vm367, 0.0
      %369 = vst.msk [vmem:[#allocation4 + $0x9] sm:$0x1] %vm367, 0.0
      %370 = vst.msk [vmem:[#allocation4 + $0x1] sm:$0xff] %vm360, %v366
      %v371 = vld [vmem:[#allocation4] sm:$0xff]
      %v372 = vld [vmem:[#allocation4 + $0x8] sm:$0x3]
      %v373 = vld [vmem:[%s3] sm:$0xff]
      %v374 = vld [vmem:[%s4] sm:$0x1]
      %v376 = vsel %vm360, %v371, 0
      %v379 = vsel %vm360, %v372, 0
      %381 = vmatpush.msra.mxu0 0.0
      %382 = vmatpush.msra.mxu0 0.0
      %383 = vmatpush.msra.mxu0 0.0
      %384 = vmatpush.msra.mxu0 0.0
      %385 = vmatpush.msra.mxu0 0.0
      %386 = vmatpush.msra.mxu0 0.0
      %387 = vmatpush.msra.mxu0 0.0
      %388 = vmatpush.msra.mxu0 0.0
      %389 = vmatpush.msra.mxu0 0.0
      %390 = vmatpush.msra.mxu0 0.0
      %391 = vmatpush.msra.mxu0 0.0
      %392 = vmatpush.msra.mxu0 0.0
      %393 = vmatpush.msra.mxu0 0.0
      %394 = vmatpush.msra.mxu0 0.0
      %395 = vmatpush.msra.mxu0 0.0
      %396 = vmatpush.msra.mxu0 %v373
      %397 = vmatmul.f32.gmra.mxu0 %v376
      %v398 = vpop.f32.mrf.mxu0
      %v399 = vadd.f32 0.0, %v398
      %400 = vmatmul.f32.gmra.mxu0 %v379
      %v401 = vpop.f32.mrf.mxu0
      %v402 = vadd.f32 0.0, %v401
      %403 = vdwg.mxu0
      %v406 = vrot.slane %v399, 1
      %v407 = vrot.slane %v402, 1
      %v408 = vsel %vm325, %v406, %v407
      %409 = vrot.lane.b32.xlu0 %v408, 120
      %v410 = vpop.permute.xlu0 %409
      %v412 = vadd.f32 %v399, %v410
      %v413 = vrot.slane %v399, 2
      %v414 = vrot.slane %v402, 2
      %v415 = vsel %vm339, %v413, %v414
      %416 = vrot.lane.b32.xlu0 %v415, 112
      %v417 = vpop.permute.xlu0 %416
      %v419 = vadd.f32 %v412, %v417
      %v421 = vperm.slane %v374, 0
      %v423 = vadd.f32 %v419, %v421
      %v424 = vmax.f32 %v423, 0.0
      %425 = vst.msk [vmem:[#allocation3] sm:$0xff] %vm360, %v424
      %v426 = vld [vmem:[#allocation3] ss:$2 sm:$0xf]
      %s427 = scalar_lea.vmem [#allocation3], 1
      %v428 = vld [vmem:[%s427] ss:$2 sm:$0xf]
      %v429 = vmax.f32 %v426, %v428
      %v430 = vld [vmem:[#allocation5] sm:$0x1]
      %v431 = vld [vmem:[%s5] sm:$0xff]
      %v433 = vsel %vm360, %v429, 0
      %435 = vmatpush.msra.mxu0 0.0
      %436 = vmatpush.msra.mxu0 0.0
      %437 = vmatpush.msra.mxu0 0.0
      %438 = vmatpush.msra.mxu0 0.0
      %439 = vmatpush.msra.mxu0 0.0
      %440 = vmatpush.msra.mxu0 0.0
      %441 = vmatpush.msra.mxu0 0.0
      %442 = vmatpush.msra.mxu0 0.0
      %443 = vmatpush.msra.mxu0 0.0
      %444 = vmatpush.msra.mxu0 0.0
      %445 = vmatpush.msra.mxu0 0.0
      %446 = vmatpush.msra.mxu0 0.0
      %447 = vmatpush.msra.mxu0 0.0
      %448 = vmatpush.msra.mxu0 0.0
      %449 = vmatpush.msra.mxu0 0.0
      %450 = vmatpush.msra.mxu0 %v431
      %451 = vmatmul.f32.gmra.mxu0 %v433
      %v452 = vpop.f32.mrf.mxu0
      %v453 = vadd.f32 0.0, %v452
      %454 = vdwg.mxu0
      %v455 = vadd.f32 %v430, %v453
      %s456 = scalar_lea.vmem %s5, 8
      %v457 = vld [vmem:[%s456] sm:$0xff]
      %v458 = vrot.slane %v429, 1
      %v459 = vsel %vm360, %v458, 0
      %461 = vmatpush.msra.mxu0 0.0
      %462 = vmatpush.msra.mxu0 0.0
      %463 = vmatpush.msra.mxu0 0.0
      %464 = vmatpush.msra.mxu0 0.0
      %465 = vmatpush.msra.mxu0 0.0
      %466 = vmatpush.msra.mxu0 0.0
      %467 = vmatpush.msra.mxu0 0.0
      %468 = vmatpush.msra.mxu0 0.0
      %469 = vmatpush.msra.mxu0 0.0
      %470 = vmatpush.msra.mxu0 0.0
      %471 = vmatpush.msra.mxu0 0.0
      %472 = vmatpush.msra.mxu0 0.0
      %473 = vmatpush.msra.mxu0 0.0
      %474 = vmatpush.msra.mxu0 0.0
      %475 = vmatpush.msra.mxu0 0.0
      %476 = vmatpush.msra.mxu0 %v457
      %477 = vmatmul.f32.gmra.mxu0 %v459
      %v478 = vpop.f32.mrf.mxu0
      %v479 = vadd.f32 0.0, %v478
      %480 = vdwg.mxu0
      %v481 = vadd.f32 %v455, %v479
      %s482 = scalar_lea.vmem %s5, 16
      %v483 = vld [vmem:[%s482] sm:$0xff]
      %v484 = vrot.slane %v429, 2
      %v485 = vsel %vm360, %v484, 0
      %487 = vmatpush.msra.mxu0 0.0
      %488 = vmatpush.msra.mxu0 0.0
      %489 = vmatpush.msra.mxu0 0.0
      %490 = vmatpush.msra.mxu0 0.0
      %491 = vmatpush.msra.mxu0 0.0
      %492 = vmatpush.msra.mxu0 0.0
      %493 = vmatpush.msra.mxu0 0.0
      %494 = vmatpush.msra.mxu0 0.0
      %495 = vmatpush.msra.mxu0 0.0
      %496 = vmatpush.msra.mxu0 0.0
      %497 = vmatpush.msra.mxu0 0.0
      %498 = vmatpush.msra.mxu0 0.0
      %499 = vmatpush.msra.mxu0 0.0
      %500 = vmatpush.msra.mxu0 0.0
      %501 = vmatpush.msra.mxu0 0.0
      %502 = vmatpush.msra.mxu0 %v483
      %503 = vmatmul.f32.gmra.mxu0 %v485
      %v504 = vpop.f32.mrf.mxu0
      %v505 = vadd.f32 0.0, %v504
      %506 = vdwg.mxu0
      %v507 = vadd.f32 %v481, %v505
      %s508 = scalar_lea.vmem %s5, 24
      %v509 = vld [vmem:[%s508] sm:$0xff]
      %v510 = vrot.slane %v429, 3
      %v511 = vsel %vm360, %v510, 0
      %513 = vmatpush.msra.mxu0 0.0
      %514 = vmatpush.msra.mxu0 0.0
      %515 = vmatpush.msra.mxu0 0.0
      %516 = vmatpush.msra.mxu0 0.0
      %517 = vmatpush.msra.mxu0 0.0
      %518 = vmatpush.msra.mxu0 0.0
      %519 = vmatpush.msra.mxu0 0.0
      %520 = vmatpush.msra.mxu0 0.0
      %521 = vmatpush.msra.mxu0 0.0
      %522 = vmatpush.msra.mxu0 0.0
      %523 = vmatpush.msra.mxu0 0.0
      %524 = vmatpush.msra.mxu0 0.0
      %525 = vmatpush.msra.mxu0 0.0
      %526 = vmatpush.msra.mxu0 0.0
      %527 = vmatpush.msra.mxu0 0.0
      %528 = vmatpush.msra.mxu0 %v509
      %529 = vmatmul.f32.gmra.mxu0 %v511
      %v530 = vpop.f32.mrf.mxu0
      %v531 = vadd.f32 0.0, %v530
      %532 = vdwg.mxu0
      %v533 = vadd.f32 %v507, %v531
      %v534 = vsub.f32 0.0, %v533
      %v535 = vmul.f32 %v534, 1.442695
      %v536 = vpow.pop %v535
      %v537 = vadd.f32 %v536, 1.0
      %v538 = vrcp.pop %v537
      %vm539 = vcmask 0
      %540 = vst.msk [vmem:[%s276] sm:$0x1] %vm539, %v538
      %p541 = scmp.lt.s32.totalorder %s20, 1
      %s542 = scalar_select %p541, %s20, 1
      %s543 = scalar_lea.vmem %s7, %s542
      // Predicated region
      $region49: #{forward.1} parent=47 // pred_check
        %p544 = pneg %p190
      $region50: #{forward.1} parent=47 // pred_check_branch
        %546 = sbr.rel (%p544) target = $region52
      $region51: #{forward.1} parent=47 // pred_region
        _
      $region52: #{forward.1} parent=47 // pred_fallthru
        _
    $region48: #{forward.1} parent=5 // pred_fallthru
      _
    %p547 = scmp.le.s32.totalorder 2, %s15
    // Predicated region
    $region53: #{forward.1} parent=5 // pred_check
      %p548 = pneg %p547
    $region54: #{forward.1} parent=5 // pred_check_branch
      %550 = sbr.rel (%p548) target = $region56
    $region55: #{forward.1} parent=5 // pred_region
      %s551 = ssub.s32 %s15, 2
      // Predicated region
      $region57: #{forward.1} parent=55 // pred_check
        %p552 = pneg %p196
      $region58: #{forward.1} parent=55 // pred_check_branch
        %554 = sbr.rel (%p552) target = $region60
      $region59: #{forward.1} parent=55 // pred_region
        %p555 = scmp.lt.s32.totalorder %s21, 1
        %s556 = scalar_select %p555, %s21, 1
        %s557 = scalar_lea.vmem %s7, %s556
      $region60: #{forward.1} parent=55 // pred_fallthru
        _
    $region56: #{forward.1} parent=5 // pred_fallthru
      _
  $region6: #{forward.1} parent=0 // loop_footer
    %s19 = sadd.s32 1, %s15
  $region7: #{forward.1} parent=0 // loop_footer_branch
    %14 = sbr.rel target = $region3
  $region8: #{forward.1} parent=0 // loop_exit
    _

</llo_original>
